<compile_context>
chip_gen: v7x
topology: tpu7x:2x2x1
jax: 0.10.0
libtpu: 0.0.40
codegen_flags: <defaults>
</compile_context>

<pallas_src>
import functools

import jax
import jax.numpy as jnp
from jax.experimental import pallas as pl
from jax.experimental.pallas import tpu as pltpu


def _vmem_capacity_bytes():
    """Physical VMEM per TensorCore (v5e/v6e: 128 MiB, v7x: 64 MiB); conservative fallback."""
    try:
        return int(pltpu.get_tpu_info().vmem_capacity_bytes)
    except Exception:
        return 64 * 1024 * 1024


def _ffn_kernel(*refs, has_b1, has_b2, single_f):
    it = iter(refs)
    x_ref = next(it)
    w1_ref = next(it)
    b1_ref = next(it) if has_b1 else None
    w2_ref = next(it)
    b2_ref = next(it) if has_b2 else None
    o_ref = next(it)
    acc_ref = None if single_f else next(it)

    f = pl.program_id(1)

    x = x_ref[...]                                                     # (tile_t, D)
    h = jnp.dot(x, w1_ref[...], preferred_element_type=jnp.float32)   # (tile_t, tile_f)
    if has_b1:
        h = h + b1_ref[f].astype(jnp.float32)                         # row f of resident (nf, tile_f)
    h = jnp.maximum(h, 0.0)                                           # ReLU
    # TODO(synk): dropout is identity at inference; a training-mode kernel would draw the
    # mask here via pltpu.prng_seed + pltpu.stateful_bernoulli.
    y = jnp.dot(h.astype(x.dtype), w2_ref[...],
                preferred_element_type=jnp.float32)                   # (tile_t, D)

    if single_f:
        # One F tile: no accumulator round-trip, store directly (lane-dense full-D tile).
        if has_b2:
            y = y + b2_ref[...].astype(jnp.float32)
        o_ref[...] = y.astype(o_ref.dtype)
    else:
        @pl.when(f == 0)
        def _():
            acc_ref[...] = jnp.zeros_like(acc_ref)

        acc_ref[...] += y

        @pl.when(f == pl.num_programs(1) - 1)
        def _():
            acc = acc_ref[...]
            if has_b2:
                acc = acc + b2_ref[...].astype(jnp.float32)
            o_ref[...] = acc.astype(o_ref.dtype)


def ffn_pallas(x2d, w1, w2, b1=None, b2=None, *, tile_t=None, tile_f=None):
    T, D = x2d.shape
    Dw, F = w1.shape
    assert Dw == D and w2.shape == (F, D)
    has_b1 = b1 is not None
    has_b2 = b2 is not None

    itemsize = jnp.dtype(x2d.dtype).itemsize
    vmem_cap = _vmem_capacity_bytes()
    # Usable per-call budget: ~51 MiB on v7x (64 MiB physical), ~102 MiB on v5e/v6e (128 MiB).
    budget = int(vmem_cap * 0.80)

    def need_bytes(tt, tf):
        nf_ = F // tf
        n = 2 * (tt * D + D * tf + tf * D + tt * D) * itemsize   # x, W1, W2, out (double-buffered)
        if has_b1:
            n += 2 * F * itemsize                                 # resident full-b1 block
        if has_b2:
            n += 2 * D * itemsize                                 # resident b2 block
        n += tt * tf * 4 + tt * tf * itemsize                     # f32 h + its input-dtype cast
        if nf_ > 1:
            n += tt * D * 4                                       # f32 accumulator scratch
        return n

    # --- Token tile: never starve the MXU with tiny tiles; no forced split for small T. ---
    if tile_t is None:
        cands = [c for c in (1024, 512, 256, 128) if c <= T and T % c == 0]
        tile_t = T if (T <= 1024 or not cands) else cands[0]
        # Shrink (floor 128) only if x/out/acc tiles alone would blow the VMEM budget.
        while (tile_t > 128 and tile_t % 2 == 0 and T % (tile_t // 2) == 0
               and 4 * tile_t * D * itemsize + tile_t * D * 4 > budget // 2):
            tile_t //= 2
    assert T % tile_t == 0

    # --- FFN tile: prefer fully-resident weights (tile_f = F -> one W1/W2 DMA for the whole
    #     kernel); otherwise the largest divisor of F that fits (fewest F steps). ---
    if tile_f is None:
        cands = [F]
        c = 4096
        while c >= 256:
            if c < F and F % c == 0:
                cands.append(c)
            c //= 2
        tile_f = cands[-1]
        for cand in cands:                         # largest first
            if need_bytes(tile_t, cand) <= budget:
                tile_f = cand
                break
    assert F % tile_f == 0

    nf = F // tile_f
    single_f = nf == 1
    need = need_bytes(tile_t, tile_f)
    vmem_limit = None
    if need > (12 << 20):
        vmem_limit = int(min(vmem_cap * 0.85, max(int(need * 1.3), 32 << 20)))

    operands = [x2d, w1]
    in_specs = [
        pl.BlockSpec((tile_t, D), lambda t, f: (t, 0)),           # x: re-DMA'd only across t
        pl.BlockSpec((D, tile_f), lambda t, f: (0, f)),           # W1 tile (resident when nf == 1)
    ]
    if has_b1:
        operands.append(b1.reshape(nf, tile_f))
        in_specs.append(pl.BlockSpec((nf, tile_f), lambda t, f: (0, 0)))   # whole b1, one DMA
    operands.append(w2)
    in_specs.append(pl.BlockSpec((tile_f, D), lambda t, f: (f, 0)))        # W2 tile (resident when nf == 1)
    if has_b2:
        operands.append(b2.reshape(1, D))
        in_specs.append(pl.BlockSpec((1, D), lambda t, f: (0, 0)))         # whole b2, one DMA

    scratch = [] if single_f else [pltpu.VMEM((tile_t, D), jnp.float32)]
    kernel = functools.partial(_ffn_kernel, has_b1=has_b1, has_b2=has_b2, single_f=single_f)

    return pl.pallas_call(
        kernel,
        out_shape=jax.ShapeDtypeStruct((T, D), x2d.dtype),
        grid_spec=pltpu.PrefetchScalarGridSpec(
            num_scalar_prefetch=0,
            grid=(T // tile_t, nf),
            in_specs=in_specs,
            out_specs=pl.BlockSpec((tile_t, D), lambda t, f: (t, 0)),
            scratch_shapes=scratch,
        ),
        compiler_params=pltpu.CompilerParams(
            dimension_semantics=("parallel", "arbitrary"),
            vmem_limit_bytes=vmem_limit,
        ),
    )(*operands)


def feed_forward(x, params, *, tile_t=None, tile_f=None):
    """x: [bs, sq, D].  Returns ReLU(x @ W1 + b1) @ W2 + b2 (dropout = identity)."""
    bs, sq, D = x.shape
    x2d = x.reshape(bs * sq, D)
    y2d = ffn_pallas(x2d, params["w1"], params["w2"],
                     params.get("b1"), params.get("b2"),
                     tile_t=tile_t, tile_f=tile_f)
    return y2d.reshape(bs, sq, D)


def _reference(x, params):
    """Pure-JAX reference mirroring the PyTorch forward (eval mode: dropout = identity)."""
    bs, sq, D = x.shape
    x2d = x.reshape(-1, D)
    h = x2d @ params["w1"]
    if params.get("b1") is not None:
        h = h + params["b1"]
    h = jnp.maximum(h, 0.0)
    y = h @ params["w2"]
    if params.get("b2") is not None:
        y = y + params["b2"]
    return y.reshape(bs, sq, D)


if __name__ == "__main__":
    # Small but lane-dense shapes (multiples of 128 avoid masked partial-lane stores).
    bs, sq = 2, 8
    hidden_dim, ffn_dim = 128, 256
    dtype = jnp.float32

    key = jax.random.PRNGKey(0)
    k_x, k_w1, k_b1, k_w2, k_b2 = jax.random.split(key, 5)

    x = jax.random.normal(k_x, (bs, sq, hidden_dim), dtype=dtype)
    params = {
        "w1": jax.random.normal(k_w1, (hidden_dim, ffn_dim), dtype=dtype) * 0.05,
        "b1": jax.random.normal(k_b1, (ffn_dim,), dtype=dtype) * 0.05,
        "w2": jax.random.normal(k_w2, (ffn_dim, hidden_dim), dtype=dtype) * 0.05,
        "b2": jax.random.normal(k_b2, (hidden_dim,), dtype=dtype) * 0.05,
    }
    ref = _reference(x, params)

    # 1) Default tiling: weights fully resident (tile_f = F), single full-T token tile.
    out = jax.jit(feed_forward)(x, params)
    jax.block_until_ready(out)
    assert out.shape == (bs, sq, hidden_dim)
    assert jnp.allclose(out, ref, atol=1e-5, rtol=1e-5)

    # 2) Forced tile_f=128 exercises the F-reduction path (accumulator + b1 row indexing).
    out_t = jax.jit(functools.partial(feed_forward, tile_f=128))(x, params)
    jax.block_until_ready(out_t)
    assert jnp.allclose(out_t, ref, atol=1e-5, rtol=1e-5)

    # 3) Bias-free (T5-style, ffn_bias=False) configuration — dedicated no-bias kernel variant.
    params_nb = {"w1": params["w1"], "w2": params["w2"], "b1": None, "b2": None}
    out_nb = jax.jit(feed_forward)(x, params_nb)
    jax.block_until_ready(out_nb)
    assert jnp.allclose(out_nb, _reference(x, params_nb), atol=1e-5, rtol=1e-5)

    print("KERNEL_OK")
</pallas_src>

<mosaic_0001>
module attributes {stable_mosaic.version = 11 : i64} {
  func.func @_ffn_kernel(%arg0: i32, %arg1: i32, %arg2: memref<16x128xf32, #tpu.memory_space<vmem>>, %arg3: memref<128x256xf32, #tpu.memory_space<vmem>>, %arg4: memref<1x256xf32, #tpu.memory_space<vmem>>, %arg5: memref<256x128xf32, #tpu.memory_space<vmem>>, %arg6: memref<1x128xf32, #tpu.memory_space<vmem>>, %arg7: memref<16x128xf32, #tpu.memory_space<vmem>>) attributes {dimension_semantics = [#tpu.dimension_semantics<parallel>, #tpu.dimension_semantics<arbitrary>], iteration_bounds = array<i64: 1, 1>, scalar_prefetch = 0 : i64, scratch_operands = 0 : i64, tpu.core_type = #tpu.core_type<tc>, window_params = [{transform_indices = @transform_0, window_bounds = array<i64: 16, 128>}, {transform_indices = @transform_1, window_bounds = array<i64: 128, 256>}, {pipeline_mode = #tpu.pipeline_mode<synchronous>, transform_indices = @transform_2, window_bounds = array<i64: 1, 256>}, {transform_indices = @transform_3, window_bounds = array<i64: 256, 128>}, {pipeline_mode = #tpu.pipeline_mode<synchronous>, transform_indices = @transform_4, window_bounds = array<i64: 1, 128>}, {transform_indices = @transform_5, window_bounds = array<i64: 16, 128>}]} {
    %c0 = arith.constant 0 : index
    %c0_0 = arith.constant 0 : index
    %0 = vector.load %arg2[%c0, %c0_0] : memref<16x128xf32, #tpu.memory_space<vmem>>, vector<16x128xf32>
    %c0_1 = arith.constant 0 : index
    %c0_2 = arith.constant 0 : index
    %1 = vector.load %arg3[%c0_1, %c0_2] : memref<128x256xf32, #tpu.memory_space<vmem>>, vector<128x256xf32>
    %cst = arith.constant dense<0.000000e+00> : vector<16x256xf32>
    %2 = tpu.matmul %0, %1, %cst {dimension_numbers = #tpu.dot_dimension_numbers<[1], [0], [0], [1], [0, 0, 1, 1], [], []>} : vector<16x128xf32>, vector<128x256xf32>, vector<16x256xf32> -> vector<16x256xf32>
    %3 = arith.index_cast %arg1 : i32 to index
    %c0_3 = arith.constant 0 : index
    %4 = vector.load %arg4[%3, %c0_3] : memref<1x256xf32, #tpu.memory_space<vmem>>, vector<1x256xf32>
    %5 = vector.shape_cast %4 : vector<1x256xf32> to vector<256xf32>
    %6 = vector.shape_cast %5 : vector<256xf32> to vector<1x256xf32>
    %7 = vector.broadcast %6 : vector<1x256xf32> to vector<16x256xf32>
    %8 = arith.addf %2, %7 : vector<16x256xf32>
    %cst_4 = arith.constant 0.000000e+00 : f32
    %9 = vector.broadcast %cst_4 : f32 to vector<16x256xf32>
    %10 = arith.maximumf %8, %9 : vector<16x256xf32>
    %c0_5 = arith.constant 0 : index
    %c0_6 = arith.constant 0 : index
    %11 = vector.load %arg5[%c0_5, %c0_6] : memref<256x128xf32, #tpu.memory_space<vmem>>, vector<256x128xf32>
    %cst_7 = arith.constant dense<0.000000e+00> : vector<16x128xf32>
    %12 = tpu.matmul %10, %11, %cst_7 {dimension_numbers = #tpu.dot_dimension_numbers<[1], [0], [0], [1], [0, 0, 1, 1], [], []>} : vector<16x256xf32>, vector<256x128xf32>, vector<16x128xf32> -> vector<16x128xf32>
    %c0_8 = arith.constant 0 : index
    %c0_9 = arith.constant 0 : index
    %13 = vector.load %arg6[%c0_8, %c0_9] : memref<1x128xf32, #tpu.memory_space<vmem>>, vector<1x128xf32>
    %14 = vector.broadcast %13 : vector<1x128xf32> to vector<16x128xf32>
    %15 = arith.addf %12, %14 : vector<16x128xf32>
    %c0_10 = arith.constant 0 : index
    %c0_11 = arith.constant 0 : index
    %16 = vector.load %arg7[%c0_10, %c0_11] : memref<16x128xf32, #tpu.memory_space<vmem>>, vector<16x128xf32>
    tpu.vector_store %arg7[%c0_10, %c0_11], %15 {strides = array<i32>} : memref<16x128xf32, #tpu.memory_space<vmem>>, vector<16x128xf32>,
    return
  }
  func.func @transform_0(%arg0: i32, %arg1: i32) -> (i32, i32) {
    %c0_i32 = arith.constant 0 : i32
    %c0_i32_0 = arith.constant 0 : i32
    return %arg0, %c0_i32 : i32, i32
  }
  func.func @transform_1(%arg0: i32, %arg1: i32) -> (i32, i32) {
    %c0_i32 = arith.constant 0 : i32
    %c0_i32_0 = arith.constant 0 : i32
    return %c0_i32, %arg1 : i32, i32
  }
  func.func @transform_2(%arg0: i32, %arg1: i32) -> (i32, i32) {
    %c0_i32 = arith.constant 0 : i32
    %c0_i32_0 = arith.constant 0 : i32
    %c0_i32_1 = arith.constant 0 : i32
    return %c0_i32, %c0_i32_0 : i32, i32
  }
  func.func @transform_3(%arg0: i32, %arg1: i32) -> (i32, i32) {
    %c0_i32 = arith.constant 0 : i32
    %c0_i32_0 = arith.constant 0 : i32
    return %arg1, %c0_i32 : i32, i32
  }
  func.func @transform_4(%arg0: i32, %arg1: i32) -> (i32, i32) {
    %c0_i32 = arith.constant 0 : i32
    %c0_i32_0 = arith.constant 0 : i32
    %c0_i32_1 = arith.constant 0 : i32
    return %c0_i32, %c0_i32_0 : i32, i32
  }
  func.func @transform_5(%arg0: i32, %arg1: i32) -> (i32, i32) {
    %c0_i32 = arith.constant 0 : i32
    %c0_i32_0 = arith.constant 0 : i32
    return %arg0, %c0_i32 : i32, i32
  }
}

</mosaic_0001>

<llo_original>
// kernel: feed_forward.1
$region0: #{feed_forward.1}
  #allocation0 [shape = 'u32[]', space=smem, size = 0x4, offset = 0x4, fixed_abs, tag = 'smem constant byte address 0x4 - core index']
  #allocation1 [shape = 'u32[144,128]{1,0:T(1,128)}', space=vmem, size = 0x12000, scoped, tag = 'internal scratch']
  %s0 = inlined_call_operand.hbm [shape: f32[16,128], index: 0, kind: input, shape index: {}]
  %s1 = inlined_call_operand.hbm [shape: f32[128,256], index: 1, kind: input, shape index: {}]
  %s2 = inlined_call_operand.vmem [shape: f32[1,256], index: 2, kind: input, shape index: {}]
  %s3 = inlined_call_operand.hbm [shape: f32[256,128], index: 3, kind: input, shape index: {}]
  %s4 = inlined_call_operand.vmem [shape: f32[1,128], index: 4, kind: input, shape index: {}]
  %s5 = inlined_call_operand.hbm [shape: f32[16,128], index: 5, kind: output, shape index: {}]
  %s6 = sld [smem:[#allocation0]]
  $region42: #{feed_forward.1} parent=0
    _
  %s8 = ssub.s32 1, %s6
  %s9 = scalar_select 0, %s8, %s6
  $region1: #{feed_forward.1} parent=0
    #allocation2 [shape = 'u8[8192]{0}', space=vmem, size = 0x2000, scoped, tag = 'input window, operand 0, single buffered']
    #allocation3 [shape = 's32[1]{0}', space=sflag, size = 0x4, scoped, tag = 'scoped memory for feed_forward.1']
    #allocation4 [shape = 's32[1]{0}', space=sflag, size = 0x4, scoped, tag = 'scoped memory for feed_forward.1']
    #allocation5 [shape = 'u8[131072]{0}', space=vmem, size = 0x20000, scoped, tag = 'input window, operand 1, single buffered']
    #allocation6 [shape = 's32[1]{0}', space=sflag, size = 0x4, scoped, tag = 'scoped memory for feed_forward.1']
    #allocation7 [shape = 'u8[131072]{0}', space=vmem, size = 0x20000, scoped, tag = 'input window, operand 3, single buffered']
    #allocation8 [shape = 'u8[8192]{0}', space=vmem, size = 0x2000, scoped, tag = 'output window, operand 0, single buffered']
    %10 = vsyncpa [#allocation3], 0
    %11 = vsyncpa [#allocation6], 0
    %12 = vsyncpa [#allocation4], 0
    // Predicated region
    $region2: #{feed_forward.1} parent=1 // pred_check
      _
    $region3: #{feed_forward.1} parent=1 // pred_check_branch
      %14 = sbr.rel (0) target = $region5
    $region4: #{feed_forward.1} parent=1 // pred_region
      %s16 = ssub.s32 256, 256
      %17 = vsyncadd [#allocation3], %s16
      %s18 = sshll.u32 [#allocation2], 4
      %s19 = int_to_ptr.vmem [resolvable:$true] %s18
      %24 = dma.hbm_to_vmem [thread:$0]  %s0, 256, %s19, [#allocation3], 128, 128, 8
    $region5: #{feed_forward.1} parent=1 // pred_fallthru
      _
    // Predicated region
    $region6: #{feed_forward.1} parent=1 // pred_check
      _
    $region7: #{feed_forward.1} parent=1 // pred_check_branch
      %26 = sbr.rel (0) target = $region9
    $region8: #{feed_forward.1} parent=1 // pred_region
      %s28 = ssub.s32 4096, 4096
      %29 = vsyncadd [#allocation6], %s28
      %s30 = sshll.u32 [#allocation5], 4
      %s31 = int_to_ptr.vmem [resolvable:$true] %s30
      %36 = dma.hbm_to_vmem [thread:$0]  %s1, 4096, %s31, [#allocation6], 256, 256, 16
    $region9: #{feed_forward.1} parent=1 // pred_fallthru
      _
    // Predicated region
    $region10: #{feed_forward.1} parent=1 // pred_check
      _
    $region11: #{feed_forward.1} parent=1 // pred_check_branch
      %38 = sbr.rel (0) target = $region13
    $region12: #{feed_forward.1} parent=1 // pred_region
      _
    $region13: #{feed_forward.1} parent=1 // pred_fallthru
      _
    // Predicated region
    $region14: #{feed_forward.1} parent=1 // pred_check
      _
    $region15: #{feed_forward.1} parent=1 // pred_check_branch
      %40 = sbr.rel (0) target = $region17
    $region16: #{feed_forward.1} parent=1 // pred_region
      %s42 = ssub.s32 4096, 4096
      %43 = vsyncadd [#allocation6], %s42
      %s44 = sshll.u32 [#allocation7], 4
      %s45 = int_to_ptr.vmem [resolvable:$true] %s44
      %50 = dma.hbm_to_vmem [thread:$0]  %s3, 4096, %s45, [#allocation6], 128, 128, 8
    $region17: #{feed_forward.1} parent=1 // pred_fallthru
      _
    // Predicated region
    $region18: #{feed_forward.1} parent=1 // pred_check
      _
    $region19: #{feed_forward.1} parent=1 // pred_check_branch
      %52 = sbr.rel (0) target = $region21
    $region20: #{feed_forward.1} parent=1 // pred_region
      _
    $region21: #{feed_forward.1} parent=1 // pred_fallthru
      _
    // Predicated region
    $region22: #{feed_forward.1} parent=1 // pred_check
      _
    $region23: #{feed_forward.1} parent=1 // pred_check_branch
      %54 = sbr.rel (0) target = $region25
    $region24: #{feed_forward.1} parent=1 // pred_region
      %55 = dma.done [#allocation3], 256
    $region25: #{feed_forward.1} parent=1 // pred_fallthru
      _
    // Predicated region
    $region26: #{feed_forward.1} parent=1 // pred_check
      _
    $region27: #{feed_forward.1} parent=1 // pred_check_branch
      %57 = sbr.rel (0) target = $region29
    $region28: #{feed_forward.1} parent=1 // pred_region
      %58 = dma.done [#allocation6], 4096
    $region29: #{feed_forward.1} parent=1 // pred_fallthru
      _
    // Predicated region
    $region30: #{feed_forward.1} parent=1 // pred_check
      _
    $region31: #{feed_forward.1} parent=1 // pred_check_branch
      %60 = sbr.rel (0) target = $region33
    $region32: #{feed_forward.1} parent=1 // pred_region
      %61 = dma.done [#allocation6], 4096
    $region33: #{feed_forward.1} parent=1 // pred_fallthru
      _
    %v62 = vld [vmem:[#allocation2] sm:$0xff]
    %v63 = vld [vmem:[#allocation2 + $0x8] sm:$0xff]
    %v64 = vld [vmem:[#allocation5] sm:$0xff]
    %v65 = vld [vmem:[#allocation5 + $0x8] sm:$0xff]
    %v66 = vld [vmem:[#allocation5 + $0x10] sm:$0xff]
    %v67 = vld [vmem:[#allocation5 + $0x18] sm:$0xff]
    %v68 = vld [vmem:[#allocation5 + $0x20] sm:$0xff]
    %v69 = vld [vmem:[#allocation5 + $0x28] sm:$0xff]
    %v70 = vld [vmem:[#allocation5 + $0x30] sm:$0xff]
    %v71 = vld [vmem:[#allocation5 + $0x38] sm:$0xff]
    %v72 = vld [vmem:[#allocation5 + $0x40] sm:$0xff]
    %v73 = vld [vmem:[#allocation5 + $0x48] sm:$0xff]
    %v74 = vld [vmem:[#allocation5 + $0x50] sm:$0xff]
    %v75 = vld [vmem:[#allocation5 + $0x58] sm:$0xff]
    %v76 = vld [vmem:[#allocation5 + $0x60] sm:$0xff]
    %v77 = vld [vmem:[#allocation5 + $0x68] sm:$0xff]
    %v78 = vld [vmem:[#allocation5 + $0x70] sm:$0xff]
    %v79 = vld [vmem:[#allocation5 + $0x78] sm:$0xff]
    %v80 = vld [vmem:[#allocation5 + $0x80] sm:$0xff]
    %v81 = vld [vmem:[#allocation5 + $0x88] sm:$0xff]
    %v82 = vld [vmem:[#allocation5 + $0x90] sm:$0xff]
    %v83 = vld [vmem:[#allocation5 + $0x98] sm:$0xff]
    %v84 = vld [vmem:[#allocation5 + $0xa0] sm:$0xff]
    %v85 = vld [vmem:[#allocation5 + $0xa8] sm:$0xff]
    %v86 = vld [vmem:[#allocation5 + $0xb0] sm:$0xff]
    %v87 = vld [vmem:[#allocation5 + $0xb8] sm:$0xff]
    %v88 = vld [vmem:[#allocation5 + $0xc0] sm:$0xff]
    %v89 = vld [vmem:[#allocation5 + $0xc8] sm:$0xff]
    %v90 = vld [vmem:[#allocation5 + $0xd0] sm:$0xff]
    %v91 = vld [vmem:[#allocation5 + $0xd8] sm:$0xff]
    %v92 = vld [vmem:[#allocation5 + $0xe0] sm:$0xff]
    %v93 = vld [vmem:[#allocation5 + $0xe8] sm:$0xff]
    %v94 = vld [vmem:[#allocation5 + $0xf0] sm:$0xff]
    %v95 = vld [vmem:[#allocation5 + $0xf8] sm:$0xff]
    %s96 = smul.u32 0, 2
    %s97 = scalar_lea.vmem %s2, %s96
    %v98 = vld [vmem:[%s97] sm:$0x3]
    %v100 = vlaneseq
    %v101 = vshrl.u32 %v100, 7
    %v102 = vsub.s32 0, %v101
    %v103 = vrot.slane %v98, %v102
    %v104 = vlaneseq
    %v105 = vshrl.u32 %v104, 7
    %v106 = vsub.s32 1, %v105
    %v107 = vrot.slane %v98, %v106
    %110 = vmatprep.subr.mxu0 %v65
    %111 = vmatpush1.msra.mxu0 %v64
    %112 = vmatprep.subr.mxu0 %v67
    %113 = vmatpush1.msra.mxu0 %v66
    %114 = vmatprep.subr.mxu0 %v69
    %115 = vmatpush1.msra.mxu0 %v68
    %116 = vmatprep.subr.mxu0 %v71
    %117 = vmatpush1.msra.mxu0 %v70
    %118 = vmatprep.subr.mxu0 %v73
    %119 = vmatpush1.msra.mxu0 %v72
    %120 = vmatprep.subr.mxu0 %v75
    %121 = vmatpush1.msra.mxu0 %v74
    %122 = vmatprep.subr.mxu0 %v77
    %123 = vmatpush1.msra.mxu0 %v76
    %124 = vmatprep.subr.mxu0 %v79
    %125 = vmatpush1.msra.mxu0 %v78
    %126 = vmatprep.subr.mxu0 %v81
    %127 = vmatpush1.msra.mxu0 %v80
    %128 = vmatprep.subr.mxu0 %v83
    %129 = vmatpush1.msra.mxu0 %v82
    %130 = vmatprep.subr.mxu0 %v85
    %131 = vmatpush1.msra.mxu0 %v84
    %132 = vmatprep.subr.mxu0 %v87
    %133 = vmatpush1.msra.mxu0 %v86
    %134 = vmatprep.subr.mxu0 %v89
    %135 = vmatpush1.msra.mxu0 %v88
    %136 = vmatprep.subr.mxu0 %v91
    %137 = vmatpush1.msra.mxu0 %v90
    %138 = vmatprep.subr.mxu0 %v93
    %139 = vmatpush1.msra.mxu0 %v92
    %140 = vmatprep.subr.mxu0 %v95
    %141 = vmatpush1.msra.mxu0 %v94
    %142 = vmatprep.subr.mxu0 0.0
    %143 = vmatpush1.msra.mxu0 0.0
    %144 = vmatprep.subr.mxu0 0.0
    %145 = vmatpush1.msra.mxu0 0.0
    %146 = vmatprep.subr.mxu0 0.0
    %147 = vmatpush1.msra.mxu0 0.0
    %148 = vmatprep.subr.mxu0 0.0
    %149 = vmatpush1.msra.mxu0 0.0
    %150 = vmatprep.subr.mxu0 0.0
    %151 = vmatpush1.msra.mxu0 0.0
    %152 = vmatprep.subr.mxu0 0.0
    %153 = vmatpush1.msra.mxu0 0.0
    %154 = vmatprep.subr.mxu0 0.0
    %155 = vmatpush1.msra.mxu0 0.0
    %156 = vmatprep.subr.mxu0 0.0
    %157 = vmatpush1.msra.mxu0 0.0
    %158 = vmatprep.subr.mxu0 0.0
    %159 = vmatpush1.msra.mxu0 0.0
    %160 = vmatprep.subr.mxu0 0.0
    %161 = vmatpush1.msra.mxu0 0.0
    %162 = vmatprep.subr.mxu0 0.0
    %163 = vmatpush1.msra.mxu0 0.0
    %164 = vmatprep.subr.mxu0 0.0
    %165 = vmatpush1.msra.mxu0 0.0
    %166 = vmatprep.subr.mxu0 0.0
    %167 = vmatpush1.msra.mxu0 0.0
    %168 = vmatprep.subr.mxu0 0.0
    %169 = vmatpush1.msra.mxu0 0.0
    %170 = vmatprep.subr.mxu0 0.0
    %171 = vmatpush1.msra.mxu0 0.0
    %172 = vmatprep.subr.mxu0 0.0
    %173 = vmatpush1.msra.mxu0 0.0
    %174 = vmatprep.mubr.f32.mxu0 0.0
    %175 = vmatmul.mubr.f32.gmra.mrb[0].mxu0 %v62
    %v176 = vpop.f32.mrb[0].mxu0
    %v177 = vadd.f32 %v103, %v176
    %v178 = vpop.f32.mrb[0].mxu0
    %v179 = vadd.f32 %v107, %v178
    %180 = vmatprep.mubr.f32.mxu0 0.0
    %181 = vmatmul.mubr.f32.gmra.mrb[0].mxu0 %v63
    %v182 = vpop.f32.mrb[0].mxu0
    %v183 = vadd.f32 %v103, %v182
    %v184 = vpop.f32.mrb[0].mxu0
    %v185 = vadd.f32 %v107, %v184
    %186 = vdwg.mxu0
    %v187 = vmax.f32 %v177, 0.0
    %v188 = vmax.f32 %v179, 0.0
    %v189 = vmax.f32 %v183, 0.0
    %v190 = vmax.f32 %v185, 0.0
    %v191 = vld [vmem:[#allocation7] sm:$0xff]
    %v192 = vld [vmem:[#allocation7 + $0x8] sm:$0xff]
    %v193 = vld [vmem:[#allocation7 + $0x10] sm:$0xff]
    %v194 = vld [vmem:[#allocation7 + $0x18] sm:$0xff]
    %v195 = vld [vmem:[#allocation7 + $0x20] sm:$0xff]
    %v196 = vld [vmem:[#allocation7 + $0x28] sm:$0xff]
    %v197 = vld [vmem:[#allocation7 + $0x30] sm:$0xff]
    %v198 = vld [vmem:[#allocation7 + $0x38] sm:$0xff]
    %v199 = vld [vmem:[#allocation7 + $0x40] sm:$0xff]
    %v200 = vld [vmem:[#allocation7 + $0x48] sm:$0xff]
    %v201 = vld [vmem:[#allocation7 + $0x50] sm:$0xff]
    %v202 = vld [vmem:[#allocation7 + $0x58] sm:$0xff]
    %v203 = vld [vmem:[#allocation7 + $0x60] sm:$0xff]
    %v204 = vld [vmem:[#allocation7 + $0x68] sm:$0xff]
    %v205 = vld [vmem:[#allocation7 + $0x70] sm:$0xff]
    %v206 = vld [vmem:[#allocation7 + $0x78] sm:$0xff]
    %v207 = vld [vmem:[#allocation7 + $0x80] sm:$0xff]
    %v208 = vld [vmem:[#allocation7 + $0x88] sm:$0xff]
    %v209 = vld [vmem:[#allocation7 + $0x90] sm:$0xff]
    %v210 = vld [vmem:[#allocation7 + $0x98] sm:$0xff]
    %v211 = vld [vmem:[#allocation7 + $0xa0] sm:$0xff]
    %v212 = vld [vmem:[#allocation7 + $0xa8] sm:$0xff]
    %v213 = vld [vmem:[#allocation7 + $0xb0] sm:$0xff]
    %v214 = vld [vmem:[#allocation7 + $0xb8] sm:$0xff]
    %v215 = vld [vmem:[#allocation7 + $0xc0] sm:$0xff]
    %v216 = vld [vmem:[#allocation7 + $0xc8] sm:$0xff]
    %v217 = vld [vmem:[#allocation7 + $0xd0] sm:$0xff]
    %v218 = vld [vmem:[#allocation7 + $0xd8] sm:$0xff]
    %v219 = vld [vmem:[#allocation7 + $0xe0] sm:$0xff]
    %v220 = vld [vmem:[#allocation7 + $0xe8] sm:$0xff]
    %v221 = vld [vmem:[#allocation7 + $0xf0] sm:$0xff]
    %v222 = vld [vmem:[#allocation7 + $0xf8] sm:$0xff]
    %v223 = vld [vmem:[%s4] sm:$0x1]
    %v225 = vlaneseq
    %v226 = vshrl.u32 %v225, 7
    %v227 = vsub.s32 0, %v226
    %v228 = vrot.slane %v223, %v227
    %230 = vmatprep.subr.mxu0 0.0
    %231 = vmatpush1.msra.mxu0 %v191
    %232 = vmatprep.subr.mxu0 0.0
    %233 = vmatpush1.msra.mxu0 %v192
    %234 = vmatprep.subr.mxu0 0.0
    %235 = vmatpush1.msra.mxu0 %v193
    %236 = vmatprep.subr.mxu0 0.0
    %237 = vmatpush1.msra.mxu0 %v194
    %238 = vmatprep.subr.mxu0 0.0
    %239 = vmatpush1.msra.mxu0 %v195
    %240 = vmatprep.subr.mxu0 0.0
    %241 = vmatpush1.msra.mxu0 %v196
    %242 = vmatprep.subr.mxu0 0.0
    %243 = vmatpush1.msra.mxu0 %v197
    %244 = vmatprep.subr.mxu0 0.0
    %245 = vmatpush1.msra.mxu0 %v198
    %246 = vmatprep.subr.mxu0 0.0
    %247 = vmatpush1.msra.mxu0 %v199
    %248 = vmatprep.subr.mxu0 0.0
    %249 = vmatpush1.msra.mxu0 %v200
    %250 = vmatprep.subr.mxu0 0.0
    %251 = vmatpush1.msra.mxu0 %v201
    %252 = vmatprep.subr.mxu0 0.0
    %253 = vmatpush1.msra.mxu0 %v202
    %254 = vmatprep.subr.mxu0 0.0
    %255 = vmatpush1.msra.mxu0 %v203
    %256 = vmatprep.subr.mxu0 0.0
    %257 = vmatpush1.msra.mxu0 %v204
    %258 = vmatprep.subr.mxu0 0.0
    %259 = vmatpush1.msra.mxu0 %v205
    %260 = vmatprep.subr.mxu0 0.0
    %261 = vmatpush1.msra.mxu0 %v206
    %262 = vmatprep.subr.mxu0 0.0
    %263 = vmatpush1.msra.mxu0 %v207
    %264 = vmatprep.subr.mxu0 0.0
    %265 = vmatpush1.msra.mxu0 %v208
    %266 = vmatprep.subr.mxu0 0.0
    %267 = vmatpush1.msra.mxu0 %v209
    %268 = vmatprep.subr.mxu0 0.0
    %269 = vmatpush1.msra.mxu0 %v210
    %270 = vmatprep.subr.mxu0 0.0
    %271 = vmatpush1.msra.mxu0 %v211
    %272 = vmatprep.subr.mxu0 0.0
    %273 = vmatpush1.msra.mxu0 %v212
    %274 = vmatprep.subr.mxu0 0.0
    %275 = vmatpush1.msra.mxu0 %v213
    %276 = vmatprep.subr.mxu0 0.0
    %277 = vmatpush1.msra.mxu0 %v214
    %278 = vmatprep.subr.mxu0 0.0
    %279 = vmatpush1.msra.mxu0 %v215
    %280 = vmatprep.subr.mxu0 0.0
    %281 = vmatpush1.msra.mxu0 %v216
    %282 = vmatprep.subr.mxu0 0.0
    %283 = vmatpush1.msra.mxu0 %v217
    %284 = vmatprep.subr.mxu0 0.0
    %285 = vmatpush1.msra.mxu0 %v218
    %286 = vmatprep.subr.mxu0 0.0
    %287 = vmatpush1.msra.mxu0 %v219
    %288 = vmatprep.subr.mxu0 0.0
    %289 = vmatpush1.msra.mxu0 %v220
    %290 = vmatprep.subr.mxu0 0.0
    %291 = vmatpush1.msra.mxu0 %v221
    %292 = vmatprep.subr.mxu0 0.0
    %293 = vmatpush1.msra.mxu0 %v222
    %294 = vmatprep.mubr.f32.mxu0 %v188
    %295 = vmatmul.mubr.f32.gmra.mrb[0].mxu0 %v187
    %v296 = vpop.f32.mrb[0].mxu0
    %v297 = vadd.f32 %v228, %v296
    %v298 = vpop.f32.mrb[0].mxu0
    %299 = vmatprep.mubr.f32.mxu0 %v190
    %300 = vmatmul.mubr.f32.gmra.mrb[0].mxu0 %v189
    %v301 = vpop.f32.mrb[0].mxu0
    %v302 = vadd.f32 %v228, %v301
    %v303 = vpop.f32.mrb[0].mxu0
    %304 = vdwg.mxu0
    %305 = vst [vmem:[#allocation8] sm:$0xff] %v297
    %306 = vst [vmem:[#allocation8 + $0x8] sm:$0xff] %v302
    // Predicated region
    $region34: #{feed_forward.1} parent=1 // pred_check
      _
    $region35: #{feed_forward.1} parent=1 // pred_check_branch
      %308 = sbr.rel (0) target = $region37
    $region36: #{feed_forward.1} parent=1 // pred_region
      %s310 = ssub.s32 256, 256
      %311 = vsyncadd [#allocation4], %s310
      %s312 = sshll.u32 [#allocation8], 4
      %s313 = int_to_ptr.vmem [resolvable:$true] %s312
      %318 = dma.vmem_to_hbm [thread:$0]  %s313, 256, %s5, [#allocation4], 128, 128, 8
    $region37: #{feed_forward.1} parent=1 // pred_fallthru
      _
    // Predicated region
    $region38: #{feed_forward.1} parent=1 // pred_check
      _
    $region39: #{feed_forward.1} parent=1 // pred_check_branch
      %320 = sbr.rel (0) target = $region41
    $region40: #{feed_forward.1} parent=1 // pred_region
      %321 = dma.done [#allocation4], 256
    $region41: #{feed_forward.1} parent=1 // pred_fallthru
      _
    %322 = vsyncpa [#allocation3], 1
    %323 = vsyncpa [#allocation6], 1
    %324 = vsyncpa [#allocation4], 1

</llo_original>
